<compile_context>
chip_gen: v5e
topology: v5e:2x2
jax: 0.10.0
libtpu: 0.0.40
codegen_flags: <defaults>
</compile_context>

<pallas_src>
import functools

import jax
import jax.numpy as jnp
from jax.experimental import pallas as pl
from jax.experimental.pallas import tpu as pltpu


def _round_up(v: int, m: int) -> int:
    return ((v + m - 1) // m) * m


def _projection_head_kernel(x_ref, w_ref, b_ref, o_ref, m_ref, *,
                            s_total: int, s_tile: int, needs_mask: bool):
    """Fused max-pool over the spatial grid axis + one collapsed Linear.

    grid = (batch_tiles, spatial_tiles); spatial is the reduction axis.
      x_ref: [TB, C, TS]  (input dtype, streamed/pipelined)
      w_ref: [C, Dp]      (f32, resident: constant index map)
      b_ref: [1, Dp]      (f32, resident)
      o_ref: [TB, Dp]     (output dtype, lane-dense)
      m_ref: VMEM scratch [TB, C] running max in the input dtype.
    """
    s = pl.program_id(1)

    @pl.when(s == 0)
    def _init():
        m_ref[...] = jnp.full(m_ref.shape, -jnp.inf, dtype=m_ref.dtype)

    x = x_ref[...]  # keep input dtype; max is exact in bf16/f32
    if needs_mask:
        # Ragged last spatial tile: mask out-of-range lanes to -inf so padded
        # VMEM contents can never win the max reduction.
        idx = s * s_tile + jax.lax.broadcasted_iota(jnp.int32, x.shape, 2)
        x = jnp.where(idx < s_total, x, jnp.array(-jnp.inf, dtype=x.dtype))

    m_ref[...] = jnp.maximum(m_ref[...], jnp.max(x, axis=-1))

    @pl.when(s == pl.num_programs(1) - 1)
    def _finalize():
        pooled = m_ref[...].astype(jnp.float32)                 # [TB, C]
        out = jnp.dot(pooled, w_ref[...],
                      preferred_element_type=jnp.float32) + b_ref[...]
        o_ref[...] = out.astype(o_ref.dtype)


def init_projection_head_params(key, in_channels, structure, dtype=jnp.float32):
    """PyTorch-Linear-style init. Weights stored as [Din, Dout]."""
    dims = [in_channels] + list(structure)
    params = []
    for i in range(len(structure)):
        d_in, d_out = dims[i], dims[i + 1]
        key, kw, kb = jax.random.split(key, 3)
        bound = 1.0 / (d_in ** 0.5)
        w = jax.random.uniform(kw, (d_in, d_out), dtype, -bound, bound)
        b = jax.random.uniform(kb, (1, d_out), dtype, -bound, bound)
        params.append((w, b))
    return params


def collapse_linear_chain(params):
    """Fold Linear_0 ∘ ... ∘ Linear_{L-1} into a single (W_eff, b_eff).

    Only valid because adn_fn defaults to torch.nn.Identity (no nonlinearity
    between layers). Done once in the wrapper, in f32.
    """
    # TODO(synk): a non-Identity adn_fn would need a per-layer path in-kernel.
    w_eff = params[0][0].astype(jnp.float32)
    b_eff = params[0][1].astype(jnp.float32)
    for w, b in params[1:]:
        w32 = w.astype(jnp.float32)
        w_eff = w_eff @ w32
        b_eff = b_eff @ w32 + b.astype(jnp.float32)
    return w_eff, b_eff


def projection_head_forward(x, params, *, max_batch_tile=128, max_s_tile=1024):
    """x: [B, C] or [B, C, *spatial]; params: list of (w [Din,Dout], b [1,Dout])."""
    if x.ndim > 2:
        x3 = x.reshape(x.shape[0], x.shape[1], -1)   # torch flatten(start_dim=2)
    else:
        x3 = x[:, :, None]                           # S=1: max is identity

    B, C, S = x3.shape
    w_eff, b_eff = collapse_linear_chain(params)
    assert w_eff.shape[0] == C, "in_channels mismatch between x and params"
    d_out = w_eff.shape[1]

    # Lane-dense padded output width (avoids masked vst on tiny Dout).
    d_pad = max(128, _round_up(d_out, 128))
    w_p = jnp.zeros((C, d_pad), jnp.float32).at[:, :d_out].set(w_eff)
    b_p = jnp.zeros((1, d_pad), jnp.float32).at[:, :d_out].set(b_eff)

    # Spatial tile: multiple of 128 (or the full dim if S < 128).
    if S >= 128:
        ts = min((S // 128) * 128, max_s_tile)
    else:
        ts = S
    needs_mask = (S % ts) != 0

    # Batch tile: full B if small, else a multiple of 8.
    if B <= max_batch_tile:
        tb = B
    else:
        tb = (max_batch_tile // 8) * 8

    nb = (B + tb - 1) // tb
    ns = (S + ts - 1) // ts

    kernel = functools.partial(
        _projection_head_kernel, s_total=S, s_tile=ts, needs_mask=needs_mask
    )

    out = pl.pallas_call(
        kernel,
        grid=(nb, ns),
        in_specs=[
            # Streamed, pipelined x tiles.
            pl.BlockSpec((tb, C, ts), lambda b, s: (b, 0, s)),
            # Weights / bias: constant index map -> fetched once, resident.
            pl.BlockSpec((C, d_pad), lambda b, s: (0, 0)),
            pl.BlockSpec((1, d_pad), lambda b, s: (0, 0)),
        ],
        out_specs=pl.BlockSpec((tb, d_pad), lambda b, s: (b, 0)),
        out_shape=jax.ShapeDtypeStruct((B, d_pad), x.dtype),
        scratch_shapes=[pltpu.VMEM((tb, C), x3.dtype)],
        compiler_params=pltpu.CompilerParams(
            dimension_semantics=("parallel", "arbitrary"),
            vmem_limit_bytes=32 * 1024 * 1024,
        ),
    )(x3, w_p, b_p)

    return out[:, :d_out]


if __name__ == "__main__":
    key = jax.random.PRNGKey(0)
    kx, kp = jax.random.split(key)

    # Small shapes consistent with the module: B=2, C=4, H=W=16.
    in_channels = 4
    structure = [32, 32, 16]
    x = jax.random.normal(kx, (2, in_channels, 16, 16), dtype=jnp.float32)

    params = init_projection_head_params(kp, in_channels, structure)

    out = projection_head_forward(x, params)
    out = jax.block_until_ready(out)

    # Pure-JAX reference of the original per-layer semantics.
    ref = jnp.max(x.reshape(x.shape[0], x.shape[1], -1), axis=-1)
    for w, b in params:
        ref = ref @ w + b
    assert out.shape == (2, structure[-1])
    assert jnp.allclose(out, ref, atol=1e-4, rtol=1e-4)

    print("KERNEL_OK")
</pallas_src>

<mosaic_0001>
module attributes {stable_mosaic.version = 11 : i64} {
  func.func @_projection_head_kernel(%arg0: i32, %arg1: i32, %arg2: memref<2x4x256xf32, #tpu.memory_space<vmem>>, %arg3: memref<4x128xf32, #tpu.memory_space<vmem>>, %arg4: memref<1x128xf32, #tpu.memory_space<vmem>>, %arg5: memref<2x128xf32, #tpu.memory_space<vmem>>, %arg6: memref<2x4xf32, #tpu.memory_space<vmem>>) attributes {dimension_semantics = [#tpu.dimension_semantics<parallel>, #tpu.dimension_semantics<arbitrary>], iteration_bounds = array<i64: 1, 1>, scalar_prefetch = 0 : i64, scratch_operands = 1 : i64, tpu.core_type = #tpu.core_type<tc>, window_params = [{transform_indices = @transform_0, window_bounds = array<i64: 2, 4, 256>}, {pipeline_mode = #tpu.pipeline_mode<synchronous>, transform_indices = @transform_1, window_bounds = array<i64: 4, 128>}, {pipeline_mode = #tpu.pipeline_mode<synchronous>, transform_indices = @transform_2, window_bounds = array<i64: 1, 128>}, {transform_indices = @transform_3, window_bounds = array<i64: 2, 128>}]} {
    %c0_i32 = arith.constant 0 : i32
    %0 = arith.cmpi eq, %arg1, %c0_i32 : i32
    %1 = arith.extui %0 : i1 to i32
    %c0_i32_0 = arith.constant 0 : i32
    %2 = arith.cmpi ne, %1, %c0_i32_0 : i32
    scf.if %2 {
      %cst_9 = arith.constant 0xFF800000 : f32
      %11 = vector.broadcast %cst_9 : f32 to vector<2x4xf32>
      %c0_10 = arith.constant 0 : index
      %c0_11 = arith.constant 0 : index
      %12 = vector.load %arg6[%c0_10, %c0_11] : memref<2x4xf32, #tpu.memory_space<vmem>>, vector<2x4xf32>
      tpu.vector_store %arg6[%c0_10, %c0_11], %11 {strides = array<i32>} : memref<2x4xf32, #tpu.memory_space<vmem>>, vector<2x4xf32>,
    } else {
    }
    %c0 = arith.constant 0 : index
    %c0_1 = arith.constant 0 : index
    %c0_2 = arith.constant 0 : index
    %3 = vector.load %arg2[%c0, %c0_1, %c0_2] : memref<2x4x256xf32, #tpu.memory_space<vmem>>, vector<2x4x256xf32>
    %c0_3 = arith.constant 0 : index
    %c0_4 = arith.constant 0 : index
    %4 = vector.load %arg6[%c0_3, %c0_4] : memref<2x4xf32, #tpu.memory_space<vmem>>, vector<2x4xf32>
    %cst = arith.constant dense<0xFF800000> : vector<2x4xf32>
    %5 = vector.multi_reduction <maximumf>, %3, %cst [2] : vector<2x4x256xf32> to vector<2x4xf32>
    %6 = arith.maximumf %4, %5 : vector<2x4xf32>
    %c0_5 = arith.constant 0 : index
    %c0_6 = arith.constant 0 : index
    %7 = vector.load %arg6[%c0_5, %c0_6] : memref<2x4xf32, #tpu.memory_space<vmem>>, vector<2x4xf32>
    tpu.vector_store %arg6[%c0_5, %c0_6], %6 {strides = array<i32>} : memref<2x4xf32, #tpu.memory_space<vmem>>, vector<2x4xf32>,
    %c0_i32_7 = arith.constant 0 : i32
    %8 = arith.cmpi eq, %arg1, %c0_i32_7 : i32
    %9 = arith.extui %8 : i1 to i32
    %c0_i32_8 = arith.constant 0 : i32
    %10 = arith.cmpi ne, %9, %c0_i32_8 : i32
    scf.if %10 {
      %c0_9 = arith.constant 0 : index
      %c0_10 = arith.constant 0 : index
      %11 = vector.load %arg6[%c0_9, %c0_10] : memref<2x4xf32, #tpu.memory_space<vmem>>, vector<2x4xf32>
      %c0_11 = arith.constant 0 : index
      %c0_12 = arith.constant 0 : index
      %12 = vector.load %arg3[%c0_11, %c0_12] : memref<4x128xf32, #tpu.memory_space<vmem>>, vector<4x128xf32>
      %cst_13 = arith.constant dense<0.000000e+00> : vector<2x128xf32>
      %13 = tpu.matmul %11, %12, %cst_13 {dimension_numbers = #tpu.dot_dimension_numbers<[1], [0], [0], [1], [0, 0, 1, 1], [], []>} : vector<2x4xf32>, vector<4x128xf32>, vector<2x128xf32> -> vector<2x128xf32>
      %c0_14 = arith.constant 0 : index
      %c0_15 = arith.constant 0 : index
      %14 = vector.load %arg4[%c0_14, %c0_15] : memref<1x128xf32, #tpu.memory_space<vmem>>, vector<1x128xf32>
      %15 = vector.broadcast %14 : vector<1x128xf32> to vector<2x128xf32>
      %16 = arith.addf %13, %15 : vector<2x128xf32>
      %c0_16 = arith.constant 0 : index
      %c0_17 = arith.constant 0 : index
      %17 = vector.load %arg5[%c0_16, %c0_17] : memref<2x128xf32, #tpu.memory_space<vmem>>, vector<2x128xf32>
      tpu.vector_store %arg5[%c0_16, %c0_17], %16 {strides = array<i32>} : memref<2x128xf32, #tpu.memory_space<vmem>>, vector<2x128xf32>,
    } else {
    }
    return
  }
  func.func @transform_0(%arg0: i32, %arg1: i32) -> (i32, i32, i32) {
    %c0_i32 = arith.constant 0 : i32
    %c0_i32_0 = arith.constant 0 : i32
    return %arg0, %c0_i32, %arg1 : i32, i32, i32
  }
  func.func @transform_1(%arg0: i32, %arg1: i32) -> (i32, i32) {
    %c0_i32 = arith.constant 0 : i32
    %c0_i32_0 = arith.constant 0 : i32
    %c0_i32_1 = arith.constant 0 : i32
    return %c0_i32, %c0_i32_0 : i32, i32
  }
  func.func @transform_2(%arg0: i32, %arg1: i32) -> (i32, i32) {
    %c0_i32 = arith.constant 0 : i32
    %c0_i32_0 = arith.constant 0 : i32
    %c0_i32_1 = arith.constant 0 : i32
    return %c0_i32, %c0_i32_0 : i32, i32
  }
  func.func @transform_3(%arg0: i32, %arg1: i32) -> (i32, i32) {
    %c0_i32 = arith.constant 0 : i32
    %c0_i32_0 = arith.constant 0 : i32
    return %arg0, %c0_i32 : i32, i32
  }
}

</mosaic_0001>

<llo_original>
// kernel: tpu_custom_call.1
$region0: #{tpu_custom_call.1}
  #allocation0 [shape = 'u32[]', space=smem, size = 0x4, offset = 0x4, fixed_abs, tag = 'smem constant byte address 0x4 - core index']
  #allocation1 [shape = 'u32[72,128]{1,0:T(1,128)}', space=vmem, size = 0x9000, scoped, tag = 'internal scratch']
  #allocation2 [shape = 'f32[2,4]{1,0:T(2,128)}', space=vmem, size = 0x400, scoped, tag = 'scratch operand']
  %s0 = inlined_call_operand.hbm [shape: f32[2,4,256], index: 0, kind: input, shape index: {}]
  %s1 = inlined_call_operand.hbm [shape: f32[4,128], index: 1, kind: input, shape index: {}]
  %s2 = inlined_call_operand.vmem [shape: f32[1,128], index: 2, kind: input, shape index: {}]
  %s3 = inlined_call_operand.hbm [shape: f32[2,128], index: 3, kind: output, shape index: {}]
  %s4 = sld [smem:[#allocation0]]
  $region38: #{tpu_custom_call.1} parent=0
    _
  %s6 = ssub.s32 1, %s4
  %s7 = scalar_select 0, %s6, %s4
  $region1: #{tpu_custom_call.1} parent=0
    #allocation3 [shape = 'u8[8192]{0}', space=vmem, size = 0x2000, scoped, tag = 'input window, operand 0, single buffered']
    #allocation4 [shape = 's32[1]{0}', space=sflag, size = 0x4, scoped, tag = 'scoped memory for tpu_custom_call.1']
    #allocation5 [shape = 's32[1]{0}', space=sflag, size = 0x4, scoped, tag = 'scoped memory for tpu_custom_call.1']
    #allocation6 [shape = 'u8[2048]{0}', space=vmem, size = 0x800, scoped, tag = 'input window, operand 1, single buffered']
    #allocation7 [shape = 's32[1]{0}', space=sflag, size = 0x4, scoped, tag = 'scoped memory for tpu_custom_call.1']
    #allocation8 [shape = 'u8[1024]{0}', space=vmem, size = 0x400, scoped, tag = 'output window, operand 0, single buffered']
    %8 = vsyncpa [#allocation4], 0
    %9 = vsyncpa [#allocation7], 0
    %10 = vsyncpa [#allocation5], 0
    // Predicated region
    $region2: #{tpu_custom_call.1} parent=1 // pred_check
      _
    $region3: #{tpu_custom_call.1} parent=1 // pred_check_branch
      %12 = sbr.rel (0) target = $region5
    $region4: #{tpu_custom_call.1} parent=1 // pred_region
      %14 = vsyncadd [#allocation4], 0
      %s15 = sshll.u32 %s0, 4
      %s16 = int_to_ptr.hbm [resolvable:$true] %s15
      %s17 = sshll.u32 [#allocation3], 4
      %s18 = int_to_ptr.vmem [resolvable:$true] %s17
      %23 = dma.hbm_to_vmem [thread:$0]  %s16, 256, %s18, [#allocation4], 128, 128, 8
    $region5: #{tpu_custom_call.1} parent=1 // pred_fallthru
      _
    // Predicated region
    $region6: #{tpu_custom_call.1} parent=1 // pred_check
      _
    $region7: #{tpu_custom_call.1} parent=1 // pred_check_branch
      %25 = sbr.rel (0) target = $region9
    $region8: #{tpu_custom_call.1} parent=1 // pred_region
      %27 = vsyncadd [#allocation7], 0
      %s29 = sshll.u32 %s1, 4
      %s30 = int_to_ptr.hbm [resolvable:$true] %s29
      %s31 = sshll.u32 [#allocation6], 4
      %s32 = int_to_ptr.vmem [resolvable:$true] %s31
      %34 = dma.hbm_to_vmem [thread:$0]  %s30, 64, %s32, [#allocation7]
    $region9: #{tpu_custom_call.1} parent=1 // pred_fallthru
      _
    // Predicated region
    $region10: #{tpu_custom_call.1} parent=1 // pred_check
      _
    $region11: #{tpu_custom_call.1} parent=1 // pred_check_branch
      %36 = sbr.rel (0) target = $region13
    $region12: #{tpu_custom_call.1} parent=1 // pred_region
      _
    $region13: #{tpu_custom_call.1} parent=1 // pred_fallthru
      _
    // Predicated region
    $region14: #{tpu_custom_call.1} parent=1 // pred_check
      _
    $region15: #{tpu_custom_call.1} parent=1 // pred_check_branch
      %38 = sbr.rel (0) target = $region17
    $region16: #{tpu_custom_call.1} parent=1 // pred_region
      %40 = dma.done [#allocation4], 256
    $region17: #{tpu_custom_call.1} parent=1 // pred_fallthru
      _
    // Predicated region
    $region18: #{tpu_custom_call.1} parent=1 // pred_check
      _
    $region19: #{tpu_custom_call.1} parent=1 // pred_check_branch
      %42 = sbr.rel (0) target = $region21
    $region20: #{tpu_custom_call.1} parent=1 // pred_region
      %44 = dma.done [#allocation7], 64
    $region21: #{tpu_custom_call.1} parent=1 // pred_fallthru
      _
    %p45 = scmp.eq.s32.totalorder 0, 0
    // Predicated region
    $region22: #{tpu_custom_call.1} parent=1 // pred_check
      %p46 = pneg %p45
    $region23: #{tpu_custom_call.1} parent=1 // pred_check_branch
      %48 = sbr.rel (%p46) target = $region25
    $region24: #{tpu_custom_call.1} parent=1 // pred_region
      %vm49 = vcmask 25600
      %50 = vst.msk [vmem:[#allocation2] sm:$0x3] %vm49, -inf
    $region25: #{tpu_custom_call.1} parent=1 // pred_fallthru
      _
    %v51 = vld [vmem:[#allocation3] sm:$0xff]
    %v52 = vld [vmem:[#allocation3 + $0x8] sm:$0xff]
    %v53 = vld [vmem:[#allocation2] sm:$0x3]
    %56 = vst [vmem:[#allocation1] ss:$2 sm:$0xff] %v51
    %v57 = vld.sshfl [vmem:[#allocation1] sm:$0xff pattern:$0x75316420]
    %v58 = vld.sshfl [vmem:[#allocation1 + $0x8] sm:$0xff pattern:$0x75316420]
    %s59 = scalar_lea.vmem [#allocation1], 16
    %60 = vst [vmem:[%s59] ss:$2 sm:$0xff] %v52
    %v61 = vld.sshfl [vmem:[#allocation1 + $0x10] sm:$0xff pattern:$0x75316420]
    %v62 = vld.sshfl [vmem:[#allocation1 + $0x18] sm:$0xff pattern:$0x75316420]
    %vm67 = vcmask 1043456
    %v68 = vsel %vm67, %v57, -inf
    %v69 = vsel %vm67, %v58, -inf
    %v70 = vmax.f32 %v68, %v69
    %71 = vmax.xlane.f32.xlu0 %v70
    %v72 = vpop.xlane.xlu0 %71
    %v73 = vsel %vm67, %v61, -inf
    %v74 = vsel %vm67, %v62, -inf
    %v75 = vmax.f32 %v73, %v74
    %76 = vmax.xlane.f32.xlu0 %v75
    %v77 = vpop.xlane.xlu0 %76
    %v80 = vlaneseq
    %v81 = vand.u32 %v80, 127
    %v82 = vperm.slane %v72, %v81
    %v83 = vperm.slane %v77, %v81
    %vm84 = vcmask 1041409
    %v85 = vsel %vm84, %v83, %v82
    %v87 = vmax.f32 %v53, %v85
    %vm88 = vcmask 25600
    %89 = vst.msk [vmem:[#allocation2] sm:$0x3] %vm88, %v87
    // Predicated region
    $region26: #{tpu_custom_call.1} parent=1 // pred_check
      %p90 = pneg %p45
    $region27: #{tpu_custom_call.1} parent=1 // pred_check_branch
      %92 = sbr.rel (%p90) target = $region29
    $region28: #{tpu_custom_call.1} parent=1 // pred_region
      %v93 = vld [vmem:[#allocation2] sm:$0x3]
      %v94 = vld [vmem:[#allocation6] sm:$0xf]
      %v95 = vld [vmem:[%s2] sm:$0x1]
      %v97 = vperm.slane %v95, 0
      %vm99 = vcmask 31744
      %v101 = vsel %vm99, %v93, 0
      %v104 = vsel %vm67, %v94, 0
      %106 = vmatpush.msra.mxu0 0.0
      %107 = vmatpush.msra.mxu0 0.0
      %108 = vmatpush.msra.mxu0 0.0
      %109 = vmatpush.msra.mxu0 0.0
      %110 = vmatpush.msra.mxu0 0.0
      %111 = vmatpush.msra.mxu0 0.0
      %112 = vmatpush.msra.mxu0 0.0
      %113 = vmatpush.msra.mxu0 0.0
      %114 = vmatpush.msra.mxu0 0.0
      %115 = vmatpush.msra.mxu0 0.0
      %116 = vmatpush.msra.mxu0 0.0
      %117 = vmatpush.msra.mxu0 0.0
      %118 = vmatpush.msra.mxu0 0.0
      %119 = vmatpush.msra.mxu0 0.0
      %120 = vmatpush.msra.mxu0 0.0
      %121 = vmatpush.msra.mxu0 %v104
      %122 = vmatmul.f32.gmra.mxu0 %v101
      %v123 = vpop.f32.mrf.mxu0
      %v124 = vadd.f32 %v97, %v123
      %125 = vdwg.mxu0
      %126 = vst [vmem:[#allocation8] sm:$0x3] %v124
    $region29: #{tpu_custom_call.1} parent=1 // pred_fallthru
      _
    // Predicated region
    $region30: #{tpu_custom_call.1} parent=1 // pred_check
      _
    $region31: #{tpu_custom_call.1} parent=1 // pred_check_branch
      %128 = sbr.rel (0) target = $region33
    $region32: #{tpu_custom_call.1} parent=1 // pred_region
      %130 = vsyncadd [#allocation5], 0
      %s132 = sshll.u32 [#allocation8], 4
      %s133 = int_to_ptr.vmem [resolvable:$true] %s132
      %s134 = sshll.u32 %s3, 4
      %s135 = int_to_ptr.hbm [resolvable:$true] %s134
      %137 = dma.vmem_to_hbm [thread:$0]  %s133, 32, %s135, [#allocation5]
    $region33: #{tpu_custom_call.1} parent=1 // pred_fallthru
      _
    // Predicated region
    $region34: #{tpu_custom_call.1} parent=1 // pred_check
      _
    $region35: #{tpu_custom_call.1} parent=1 // pred_check_branch
      %139 = sbr.rel (0) target = $region37
    $region36: #{tpu_custom_call.1} parent=1 // pred_region
      %141 = dma.done [#allocation5], 32
    $region37: #{tpu_custom_call.1} parent=1 // pred_fallthru
      _
    %142 = vsyncpa [#allocation4], 1
    %143 = vsyncpa [#allocation7], 1
    %144 = vsyncpa [#allocation5], 1

</llo_original>
